<compile_context>
chip_gen: v5e
topology: v5e:2x2
jax: 0.10.0
libtpu: 0.0.40
codegen_flags: <defaults>
</compile_context>

<pallas_src>
import functools

import jax
import jax.numpy as jnp
import numpy as np
from jax.experimental import pallas as pl
from jax.experimental.pallas import tpu as pltpu

_MIB = 1024 * 1024


def _round_up(n, m):
    return ((n + m - 1) // m) * m


# ---------------------------------------------------------------------------
# Pallas kernel: fused linear1 -> relu -> linear2 -> relu -> mask -> residual
# ---------------------------------------------------------------------------
def ffn_kernel(x_ref, keep_ref, w1_ref, b1_ref, w2_ref, b2_ref, o_ref):
    x = x_ref[...]                                           # (tm, D) f32 (or bf16)
    # linear1: bf16 MXU inputs, f32 accumulate; bias/relu in f32 on the VPU.
    h = jnp.dot(x.astype(jnp.bfloat16), w1_ref[...],
                preferred_element_type=jnp.float32) + b1_ref[...]
    h = jnp.maximum(h, 0.0)
    # linear2 + relu
    y = jnp.dot(h.astype(jnp.bfloat16), w2_ref[...],
                preferred_element_type=jnp.float32) + b2_ref[...]
    y = jnp.maximum(y, 0.0)
    # masked_fill(mask == 1, 0)  ==  y * keep, keep = 1 - mask (f32 {0,1})
    y = y * keep_ref[...]                                    # (tm, 1) broadcast
    # residual in f32
    o_ref[...] = (x.astype(jnp.float32) + y).astype(o_ref.dtype)


# ---------------------------------------------------------------------------
# Host-side helpers
# ---------------------------------------------------------------------------
def prepare_params(w1, b1, w2, b2):
    """Hoisted per-model preprocessing (do once, reuse across forward calls).

    w1: [D, H] (= linear1.weight.T), b1: [H], w2: [H, D], b2: [D].
    """
    H = w1.shape[1]
    D = w2.shape[1]
    return {
        "w1": jnp.asarray(w1, jnp.bfloat16),                 # MXU operand
        "b1": jnp.asarray(b1, jnp.float32).reshape(1, H),
        "w2": jnp.asarray(w2, jnp.bfloat16),
        "b2": jnp.asarray(b2, jnp.float32).reshape(1, D),
    }


def _select_tm(M, tm_req):
    """Largest multiple-of-8 row tile <= tm_req / row count, with >=2 grid
    steps when rows allow it (so both v7x TensorCores are used)."""
    tm = max(8, (min(tm_req, _round_up(M, 8)) // 8) * 8)
    if M >= 16 and pl.cdiv(M, tm) < 2:
        tm = max(8, _round_up((M + 1) // 2, 8))
    return tm


def _vmem_limit_bytes(tm, D, H, single_buffer_weights, x_bytes_per_elt):
    """Size-derived VMEM budget with headroom, capped below physical VMEM."""
    lane = lambda n: _round_up(n, 128)
    f32, bf16 = 4, 2
    # Streamed operands: double-buffered by the auto-pipeline.
    x_b = 2 * tm * lane(D) * x_bytes_per_elt
    keep_b = 2 * tm * lane(1) * f32
    out_b = 2 * tm * lane(D) * f32
    # Resident operands (bf16 weights, f32 biases); x1 if Buffered(1), x2 else.
    wmul = 1 if single_buffer_weights else 2
    w_b = wmul * (_round_up(D, 16) * lane(H) * bf16 +
                  _round_up(H, 16) * lane(D) * bf16 +
                  8 * lane(H) * f32 +
                  8 * lane(D) * f32)
    # In-kernel f32 intermediates (h and y) spill to VMEM, not vregs.
    tmp_b = tm * lane(H) * f32 + tm * lane(D) * f32
    budget = x_b + keep_b + out_b + w_b + tmp_b + 8 * _MIB   # headroom
    try:
        phys = pltpu.get_tpu_info().vmem_capacity_bytes      # 64 MiB v7x, 128 MiB v5e/v6e
    except Exception:
        phys = 64 * _MIB                                     # conservative (v7x)
    cap = max(16 * _MIB, phys - 8 * _MIB)
    return int(max(16 * _MIB, min(budget, cap)))


@functools.lru_cache(maxsize=None)
def _supports_buffered_weights():
    """Feature-detect BlockSpec(pipeline_mode=pl.Buffered(1)) at construction."""
    if not hasattr(pl, "Buffered"):
        return False
    try:
        pl.BlockSpec((8, 128), lambda i: (0, 0), pipeline_mode=pl.Buffered(1))
        return True
    except TypeError:
        return False


def _build_call(M, D, H, tm, single_buffer_weights, x_bytes_per_elt):
    wkw = {"pipeline_mode": pl.Buffered(1)} if single_buffer_weights else {}
    return pl.pallas_call(
        ffn_kernel,
        out_shape=jax.ShapeDtypeStruct((M, D), jnp.float32),
        grid_spec=pltpu.PrefetchScalarGridSpec(
            num_scalar_prefetch=0,
            grid=(pl.cdiv(M, tm),),                           # ragged tail handled by Pallas
            in_specs=[
                pl.BlockSpec((tm, D), lambda i: (i, 0)),      # src rows (streamed)
                pl.BlockSpec((tm, 1), lambda i: (i, 0)),      # keep rows (streamed)
                pl.BlockSpec((D, H), lambda i: (0, 0), **wkw),  # W1 (grid-invariant)
                pl.BlockSpec((1, H), lambda i: (0, 0), **wkw),  # b1
                pl.BlockSpec((H, D), lambda i: (0, 0), **wkw),  # W2
                pl.BlockSpec((1, D), lambda i: (0, 0), **wkw),  # b2
            ],
            out_specs=pl.BlockSpec((tm, D), lambda i: (i, 0)),  # lane-dense (D mult of 128)
        ),
        compiler_params=pltpu.CompilerParams(
            dimension_semantics=("parallel",),                # rows shard across TCs (v7x)
            vmem_limit_bytes=_vmem_limit_bytes(
                tm, D, H, single_buffer_weights, x_bytes_per_elt),
        ),
    )


def dummy_func_forward(src, func_mask, params, *, tm=1024, stream_src_bf16=False):
    """src: [B, S, D] f32, func_mask: [B, S] uint8, params: prepare_params(...).

    Returns [B, S, D] f32.  tm: requested row tile (auto-capped).
    stream_src_bf16: halve src HBM bytes (residual then uses bf16-rounded src).
    """
    B, S, D = src.shape
    H = params["w1"].shape[1]
    M = B * S
    tm_eff = _select_tm(M, tm)

    x_dtype = jnp.bfloat16 if stream_src_bf16 else jnp.float32
    x2d = src.reshape(M, D).astype(x_dtype)
    keep2d = 1.0 - func_mask.reshape(M, 1).astype(jnp.float32)

    use_buffered = _supports_buffered_weights()
    args = (x2d, keep2d, params["w1"], params["b1"], params["w2"], params["b2"])
    try:
        out = _build_call(M, D, H, tm_eff, use_buffered, x2d.dtype.itemsize)(*args)
    except Exception as e:
        # Narrow fallback: only retry (with default double-buffered weights) if
        # the failure is about the pipeline_mode feature itself; genuine errors
        # (e.g. VMEM OOM) propagate.
        msg = str(e).lower()
        if use_buffered and any(k in msg for k in
                                ("pipeline_mode", "pipeline mode", "buffered", "buffer_count")):
            out = _build_call(M, D, H, tm_eff, False, x2d.dtype.itemsize)(*args)
        else:
            raise
    return out.reshape(B, S, D)


# ---------------------------------------------------------------------------
# Glue (plain JAX): get_mask, matching DummyFunc.get_mask semantics
# ---------------------------------------------------------------------------
def get_mask(src, type_vec, eps=1e-6):
    threshold = 1.0 / src.shape[1] + eps
    norm = jnp.linalg.norm(src, axis=2, keepdims=True)
    normalized_x = src / jnp.maximum(norm, 1e-12)            # F.normalize(dim=2)
    scores = normalized_x @ type_vec                         # [B, S]
    scores = jax.nn.softmax(scores, axis=1)
    mask = 1 - (scores > threshold).astype(jnp.uint8)
    return mask


# ---------------------------------------------------------------------------
# References (plain JAX) for sanity checks
# ---------------------------------------------------------------------------
def reference_forward_f32(src, func_mask, w1, b1, w2, b2):
    h = jnp.maximum(src @ w1 + b1, 0.0)
    y = jnp.maximum(h @ w2 + b2, 0.0)
    keep = 1.0 - func_mask[..., None].astype(jnp.float32)
    return src + y * keep


def reference_forward_bf16_mxu(src, func_mask, w1, b1, w2, b2):
    """Same math as the kernel: bf16 MXU inputs, f32 accumulate/elementwise."""
    B, S, D = src.shape
    x = src.reshape(B * S, D)
    h = jnp.dot(x.astype(jnp.bfloat16), w1.astype(jnp.bfloat16),
                preferred_element_type=jnp.float32) + b1
    h = jnp.maximum(h, 0.0)
    y = jnp.dot(h.astype(jnp.bfloat16), w2.astype(jnp.bfloat16),
                preferred_element_type=jnp.float32) + b2
    y = jnp.maximum(y, 0.0)
    keep = 1.0 - func_mask.reshape(B * S, 1).astype(jnp.float32)
    return (x + y * keep).reshape(B, S, D)


if __name__ == "__main__":
    # Small shapes consistent with the module; dim_model is a multiple of 128
    # so the output block is lane-dense.
    B, S, D, Hid = 2, 8, 128, 256

    key = jax.random.PRNGKey(0)
    k_src, k_w1, k_b1, k_w2, k_b2, k_tv = jax.random.split(key, 6)

    src = jax.random.normal(k_src, (B, S, D), dtype=jnp.float32)

    # Deterministic parameter init (nn.Linear-style uniform bounds).
    bound1 = 1.0 / np.sqrt(D)
    w1 = jax.random.uniform(k_w1, (D, Hid), minval=-bound1, maxval=bound1,
                            dtype=jnp.float32)            # = linear1.weight.T
    b1 = jax.random.uniform(k_b1, (Hid,), minval=-bound1, maxval=bound1,
                            dtype=jnp.float32)
    bound2 = 1.0 / np.sqrt(Hid)
    w2 = jax.random.uniform(k_w2, (Hid, D), minval=-bound2, maxval=bound2,
                            dtype=jnp.float32)            # = linear2.weight.T
    b2 = jax.random.uniform(k_b2, (D,), minval=-bound2, maxval=bound2,
                            dtype=jnp.float32)

    tv = jax.random.normal(k_tv, (D,), dtype=jnp.float32)
    type_vec = tv / jnp.linalg.norm(tv)                   # F.normalize(randn(D))

    # func_mask from get_mask (key_padding_mask=None branch of forward)
    func_mask = get_mask(src, type_vec)

    # TODO(synk): dropout is treated as identity (inference mode); stochastic
    # training-mode dropout is not reproduced.
    params = prepare_params(w1, b1, w2, b2)               # hoisted weight casts
    out = dummy_func_forward(src, func_mask, params, tm=1024)
    out = jax.block_until_ready(out)

    # Tight check against a reference using the same bf16-MXU math.
    ref_bf16 = reference_forward_bf16_mxu(src, func_mask, w1, b1, w2, b2)
    np.testing.assert_allclose(np.asarray(out), np.asarray(ref_bf16),
                               rtol=2e-3, atol=2e-3)

    # Loose (bf16-appropriate) check against the pure-f32 module semantics.
    ref_f32 = reference_forward_f32(src, func_mask, w1, b1, w2, b2)
    np.testing.assert_allclose(np.asarray(out), np.asarray(ref_f32),
                               rtol=3e-2, atol=3e-2)

    print("KERNEL_OK")
</pallas_src>

<mosaic_0001>
module attributes {stable_mosaic.version = 11 : i64} {
  func.func @ffn_kernel(%arg0: i32, %arg1: memref<8x128xf32, #tpu.memory_space<vmem>>, %arg2: memref<8x1xf32, #tpu.memory_space<vmem>>, %arg3: memref<128x256xbf16, #tpu.memory_space<vmem>>, %arg4: memref<1x256xf32, #tpu.memory_space<vmem>>, %arg5: memref<256x128xbf16, #tpu.memory_space<vmem>>, %arg6: memref<1x128xf32, #tpu.memory_space<vmem>>, %arg7: memref<8x128xf32, #tpu.memory_space<vmem>>) attributes {dimension_semantics = [#tpu.dimension_semantics<parallel>], iteration_bounds = array<i64: 2>, scalar_prefetch = 0 : i64, scratch_operands = 0 : i64, tpu.core_type = #tpu.core_type<tc>, window_params = [{transform_indices = @transform_0, window_bounds = array<i64: 8, 128>}, {transform_indices = @transform_1, window_bounds = array<i64: 8, 1>}, {pipeline_mode = #tpu.pipeline_mode<synchronous>, transform_indices = @transform_2, window_bounds = array<i64: 128, 256>}, {pipeline_mode = #tpu.pipeline_mode<synchronous>, transform_indices = @transform_3, window_bounds = array<i64: 1, 256>}, {pipeline_mode = #tpu.pipeline_mode<synchronous>, transform_indices = @transform_4, window_bounds = array<i64: 256, 128>}, {pipeline_mode = #tpu.pipeline_mode<synchronous>, transform_indices = @transform_5, window_bounds = array<i64: 1, 128>}, {transform_indices = @transform_6, window_bounds = array<i64: 8, 128>}]} {
    %c0 = arith.constant 0 : index
    %c0_0 = arith.constant 0 : index
    %0 = vector.load %arg1[%c0, %c0_0] : memref<8x128xf32, #tpu.memory_space<vmem>>, vector<8x128xf32>
    %1 = arith.truncf %0 : vector<8x128xf32> to vector<8x128xbf16>
    %c0_1 = arith.constant 0 : index
    %c0_2 = arith.constant 0 : index
    %2 = vector.load %arg3[%c0_1, %c0_2] : memref<128x256xbf16, #tpu.memory_space<vmem>>, vector<128x256xbf16>
    %cst = arith.constant dense<0.000000e+00> : vector<8x256xf32>
    %3 = tpu.matmul %1, %2, %cst {dimension_numbers = #tpu.dot_dimension_numbers<[1], [0], [0], [1], [0, 0, 1, 1], [], []>} : vector<8x128xbf16>, vector<128x256xbf16>, vector<8x256xf32> -> vector<8x256xf32>
    %c0_3 = arith.constant 0 : index
    %c0_4 = arith.constant 0 : index
    %4 = vector.load %arg4[%c0_3, %c0_4] : memref<1x256xf32, #tpu.memory_space<vmem>>, vector<1x256xf32>
    %5 = vector.broadcast %4 : vector<1x256xf32> to vector<8x256xf32>
    %6 = arith.addf %3, %5 : vector<8x256xf32>
    %cst_5 = arith.constant 0.000000e+00 : f32
    %7 = vector.broadcast %cst_5 : f32 to vector<8x256xf32>
    %8 = arith.maximumf %6, %7 : vector<8x256xf32>
    %9 = arith.truncf %8 : vector<8x256xf32> to vector<8x256xbf16>
    %c0_6 = arith.constant 0 : index
    %c0_7 = arith.constant 0 : index
    %10 = vector.load %arg5[%c0_6, %c0_7] : memref<256x128xbf16, #tpu.memory_space<vmem>>, vector<256x128xbf16>
    %cst_8 = arith.constant dense<0.000000e+00> : vector<8x128xf32>
    %11 = tpu.matmul %9, %10, %cst_8 {dimension_numbers = #tpu.dot_dimension_numbers<[1], [0], [0], [1], [0, 0, 1, 1], [], []>} : vector<8x256xbf16>, vector<256x128xbf16>, vector<8x128xf32> -> vector<8x128xf32>
    %c0_9 = arith.constant 0 : index
    %c0_10 = arith.constant 0 : index
    %12 = vector.load %arg6[%c0_9, %c0_10] : memref<1x128xf32, #tpu.memory_space<vmem>>, vector<1x128xf32>
    %13 = vector.broadcast %12 : vector<1x128xf32> to vector<8x128xf32>
    %14 = arith.addf %11, %13 : vector<8x128xf32>
    %cst_11 = arith.constant 0.000000e+00 : f32
    %15 = vector.broadcast %cst_11 : f32 to vector<8x128xf32>
    %16 = arith.maximumf %14, %15 : vector<8x128xf32>
    %c0_12 = arith.constant 0 : index
    %c0_13 = arith.constant 0 : index
    %17 = vector.load %arg2[%c0_12, %c0_13] : memref<8x1xf32, #tpu.memory_space<vmem>>, vector<8x1xf32>
    %18 = vector.broadcast %17 : vector<8x1xf32> to vector<8x128xf32>
    %19 = arith.mulf %16, %18 : vector<8x128xf32>
    %20 = arith.addf %0, %19 : vector<8x128xf32>
    %c0_14 = arith.constant 0 : index
    %c0_15 = arith.constant 0 : index
    %21 = vector.load %arg7[%c0_14, %c0_15] : memref<8x128xf32, #tpu.memory_space<vmem>>, vector<8x128xf32>
    tpu.vector_store %arg7[%c0_14, %c0_15], %20 {strides = array<i32>} : memref<8x128xf32, #tpu.memory_space<vmem>>, vector<8x128xf32>,
    return
  }
  func.func @transform_0(%arg0: i32) -> (i32, i32) {
    %c0_i32 = arith.constant 0 : i32
    %c0_i32_0 = arith.constant 0 : i32
    return %arg0, %c0_i32 : i32, i32
  }
  func.func @transform_1(%arg0: i32) -> (i32, i32) {
    %c0_i32 = arith.constant 0 : i32
    %c0_i32_0 = arith.constant 0 : i32
    return %arg0, %c0_i32 : i32, i32
  }
  func.func @transform_2(%arg0: i32) -> (i32, i32) {
    %c0_i32 = arith.constant 0 : i32
    %c0_i32_0 = arith.constant 0 : i32
    %c0_i32_1 = arith.constant 0 : i32
    return %c0_i32, %c0_i32_0 : i32, i32
  }
  func.func @transform_3(%arg0: i32) -> (i32, i32) {
    %c0_i32 = arith.constant 0 : i32
    %c0_i32_0 = arith.constant 0 : i32
    %c0_i32_1 = arith.constant 0 : i32
    return %c0_i32, %c0_i32_0 : i32, i32
  }
  func.func @transform_4(%arg0: i32) -> (i32, i32) {
    %c0_i32 = arith.constant 0 : i32
    %c0_i32_0 = arith.constant 0 : i32
    %c0_i32_1 = arith.constant 0 : i32
    return %c0_i32, %c0_i32_0 : i32, i32
  }
  func.func @transform_5(%arg0: i32) -> (i32, i32) {
    %c0_i32 = arith.constant 0 : i32
    %c0_i32_0 = arith.constant 0 : i32
    %c0_i32_1 = arith.constant 0 : i32
    return %c0_i32, %c0_i32_0 : i32, i32
  }
  func.func @transform_6(%arg0: i32) -> (i32, i32) {
    %c0_i32 = arith.constant 0 : i32
    %c0_i32_0 = arith.constant 0 : i32
    return %arg0, %c0_i32 : i32, i32
  }
}

</mosaic_0001>

<llo_original>
// kernel: tpu_custom_call.1
$region0: #{tpu_custom_call.1}
  #allocation0 [shape = 'u32[]', space=smem, size = 0x4, offset = 0x4, fixed_abs, tag = 'smem constant byte address 0x4 - core index']
  #allocation1 [shape = 'u32[72,128]{1,0:T(1,128)}', space=vmem, size = 0x9000, scoped, tag = 'internal scratch']
  %s0 = inlined_call_operand.vmem [shape: f32[16,128], index: 0, kind: input, shape index: {}]
  %s1 = inlined_call_operand.vmem [shape: f32[16,1], index: 1, kind: input, shape index: {}]
  %s2 = inlined_call_operand.hbm [shape: bf16[128,256], index: 2, kind: input, shape index: {}]
  %s3 = inlined_call_operand.vmem [shape: f32[1,256], index: 3, kind: input, shape index: {}]
  %s4 = inlined_call_operand.hbm [shape: bf16[256,128], index: 4, kind: input, shape index: {}]
  %s5 = inlined_call_operand.vmem [shape: f32[1,128], index: 5, kind: input, shape index: {}]
  %s6 = inlined_call_operand.hbm [shape: f32[16,128], index: 6, kind: output, shape index: {}]
  %s7 = sld [smem:[#allocation0]]
  $region65: #{tpu_custom_call.1} parent=0
    _
  %s9 = ssub.s32 1, %s7
  %s10 = scalar_select 0, %s9, %s7
  $region1: #{tpu_custom_call.1} parent=0
    #allocation2 [shape = 'u8[65536]{0}', space=vmem, size = 0x10000, scoped, tag = 'input window, operand 2, single buffered']
    #allocation3 [shape = 's32[2]{0}', space=sflag, size = 0x8, scoped, tag = 'scoped memory for tpu_custom_call.1']
    #allocation4 [shape = 's32[2]{0}', space=sflag, size = 0x8, scoped, tag = 'scoped memory for tpu_custom_call.1']
    #allocation5 [shape = 'u8[65536]{0}', space=vmem, size = 0x10000, scoped, tag = 'input window, operand 4, single buffered']
    #allocation6 [shape = 's32[1]{0}', space=sflag, size = 0x4, scoped, tag = 'scoped memory for tpu_custom_call.1']
    #allocation7 [shape = 'u8[8192]{0}', space=vmem, size = 0x2000, scoped, tag = 'output window, operand 0']
    %11 = vsyncpa [#allocation3], 0
    %12 = vsyncpa [#allocation6], 0
    %13 = vsyncpa [#allocation4], 0
    %s14 = scalar_lea.sflag [#allocation4], 1
    %15 = vsyncpa %s14, 0
    loop: start=0, step=1, limit=4
    $region2: #{tpu_custom_call.1} parent=1 // loop_pre_header
      _
    $region3: #{tpu_custom_call.1} parent=1 // loop_header
      %s17 = sphi 0, %s21
      %p18 = scmp.ge.s32.totalorder %s17, 4
      %s27 = sphi 0, %s29
      %s30 = sphi 0, %s27
      %s31 = sphi 0, %s30
      %s47 = sphi 0, %s31
      %s53 = sphi 0, %s55
      %s56 = sphi 0, %s53
      %s57 = sphi 0, %s56
      %s73 = sphi 0, %s57
      %s77 = sphi 0, %s77
      %s79 = sphi 0, %s77
      %s80 = sphi 0, %s79
      %s94 = sphi 0, %s80
      %s98 = sphi 0, %s98
      %s100 = sphi 0, %s98
      %s101 = sphi 0, %s100
      %s115 = sphi 0, %s101
      %s119 = sphi 0, %s119
      %s121 = sphi 0, %s119
      %s122 = sphi 0, %s121
      %s136 = sphi 0, %s122
      %s140 = sphi 0, %s140
      %s142 = sphi 0, %s140
      %s143 = sphi 0, %s142
      %s157 = sphi 0, %s143
      %s163 = sphi 0, %s165
      %s166 = sphi 0, %s163
      %s167 = sphi 0, %s166
      %s183 = sphi 0, %s167
    $region4: #{tpu_custom_call.1} parent=1 // loop_header_branch
      %20 = sbr.rel (%p18) target = $region8
    $region5: #{tpu_custom_call.1} parent=1 // loop_body
      %s22 = ssub.s32 %s17, 1
      %s23 = ssub.s32 %s17, 2
      %s24 = sadd.s32 %s17, 1
      %s25 = ssub.s32 %s17, %s24
      %p26 = scmp.eq.s32.totalorder %s25, 0
      %s28 = sadd.s32 %s27, 1
      %s29 = scalar_select %p26, %s27, %s28
      %p32 = pneg %p26
      %p33 = scmp.eq.s32.totalorder %s17, 1
      %p34 = por %p32, %p33
      %p35 = scmp.ne.s32.totalorder %s27, %s30
      %p36 = scmp.eq.s32.totalorder %s17, 0
      %p37 = por %p35, %p36
      %p38 = scmp.ne.s32.totalorder %s27, %s30
      %p39 = scmp.eq.s32.totalorder %s22, 1
      %p40 = por %p38, %p39
      %p41 = scmp.ne.s32.totalorder %s30, %s31
      %p42 = scmp.eq.s32.totalorder %s22, 0
      %p43 = por %p41, %p42
      %p44 = scmp.ne.s32.totalorder %s30, %s31
      %p45 = scmp.eq.s32.totalorder %s23, 1
      %p46 = por %p44, %p45
      %p48 = scmp.ne.s32.totalorder %s31, %s47
      %p49 = scmp.eq.s32.totalorder %s23, 0
      %p50 = por %p48, %p49
      %s51 = ssub.s32 %s17, %s24
      %p52 = scmp.eq.s32.totalorder %s51, 0
      %s54 = sadd.s32 %s53, 1
      %s55 = scalar_select %p52, %s53, %s54
      %p58 = pneg %p52
      %p59 = scmp.eq.s32.totalorder %s17, 1
      %p60 = por %p58, %p59
      %p61 = scmp.ne.s32.totalorder %s53, %s56
      %p62 = scmp.eq.s32.totalorder %s17, 0
      %p63 = por %p61, %p62
      %p64 = scmp.ne.s32.totalorder %s53, %s56
      %p65 = scmp.eq.s32.totalorder %s22, 1
      %p66 = por %p64, %p65
      %p67 = scmp.ne.s32.totalorder %s56, %s57
      %p68 = scmp.eq.s32.totalorder %s22, 0
      %p69 = por %p67, %p68
      %p70 = scmp.ne.s32.totalorder %s56, %s57
      %p71 = scmp.eq.s32.totalorder %s23, 1
      %p72 = por %p70, %p71
      %p74 = scmp.ne.s32.totalorder %s57, %s73
      %p75 = scmp.eq.s32.totalorder %s23, 0
      %p76 = por %p74, %p75
      %s78 = sadd.s32 %s77, 1
      %p81 = scmp.eq.s32.totalorder %s17, 1
      %p82 = scmp.ne.s32.totalorder %s77, %s79
      %p83 = scmp.eq.s32.totalorder %s17, 0
      %p84 = por %p82, %p83
      %p85 = scmp.ne.s32.totalorder %s77, %s79
      %p86 = scmp.eq.s32.totalorder %s22, 1
      %p87 = por %p85, %p86
      %p88 = scmp.ne.s32.totalorder %s79, %s80
      %p89 = scmp.eq.s32.totalorder %s22, 0
      %p90 = por %p88, %p89
      %p91 = scmp.ne.s32.totalorder %s79, %s80
      %p92 = scmp.eq.s32.totalorder %s23, 1
      %p93 = por %p91, %p92
      %p95 = scmp.ne.s32.totalorder %s80, %s94
      %p96 = scmp.eq.s32.totalorder %s23, 0
      %p97 = por %p95, %p96
      %s99 = sadd.s32 %s98, 1
      %p102 = scmp.eq.s32.totalorder %s17, 1
      %p103 = scmp.ne.s32.totalorder %s98, %s100
      %p104 = scmp.eq.s32.totalorder %s17, 0
      %p105 = por %p103, %p104
      %p106 = scmp.ne.s32.totalorder %s98, %s100
      %p107 = scmp.eq.s32.totalorder %s22, 1
      %p108 = por %p106, %p107
      %p109 = scmp.ne.s32.totalorder %s100, %s101
      %p110 = scmp.eq.s32.totalorder %s22, 0
      %p111 = por %p109, %p110
      %p112 = scmp.ne.s32.totalorder %s100, %s101
      %p113 = scmp.eq.s32.totalorder %s23, 1
      %p114 = por %p112, %p113
      %p116 = scmp.ne.s32.totalorder %s101, %s115
      %p117 = scmp.eq.s32.totalorder %s23, 0
      %p118 = por %p116, %p117
      %s120 = sadd.s32 %s119, 1
      %p123 = scmp.eq.s32.totalorder %s17, 1
      %p124 = scmp.ne.s32.totalorder %s119, %s121
      %p125 = scmp.eq.s32.totalorder %s17, 0
      %p126 = por %p124, %p125
      %p127 = scmp.ne.s32.totalorder %s119, %s121
      %p128 = scmp.eq.s32.totalorder %s22, 1
      %p129 = por %p127, %p128
      %p130 = scmp.ne.s32.totalorder %s121, %s122
      %p131 = scmp.eq.s32.totalorder %s22, 0
      %p132 = por %p130, %p131
      %p133 = scmp.ne.s32.totalorder %s121, %s122
      %p134 = scmp.eq.s32.totalorder %s23, 1
      %p135 = por %p133, %p134
      %p137 = scmp.ne.s32.totalorder %s122, %s136
      %p138 = scmp.eq.s32.totalorder %s23, 0
      %p139 = por %p137, %p138
      %s141 = sadd.s32 %s140, 1
      %p144 = scmp.eq.s32.totalorder %s17, 1
      %p145 = scmp.ne.s32.totalorder %s140, %s142
      %p146 = scmp.eq.s32.totalorder %s17, 0
      %p147 = por %p145, %p146
      %p148 = scmp.ne.s32.totalorder %s140, %s142
      %p149 = scmp.eq.s32.totalorder %s22, 1
      %p150 = por %p148, %p149
      %p151 = scmp.ne.s32.totalorder %s142, %s143
      %p152 = scmp.eq.s32.totalorder %s22, 0
      %p153 = por %p151, %p152
      %p154 = scmp.ne.s32.totalorder %s142, %s143
      %p155 = scmp.eq.s32.totalorder %s23, 1
      %p156 = por %p154, %p155
      %p158 = scmp.ne.s32.totalorder %s143, %s157
      %p159 = scmp.eq.s32.totalorder %s23, 0
      %p160 = por %p158, %p159
      %s161 = ssub.s32 %s17, %s24
      %p162 = scmp.eq.s32.totalorder %s161, 0
      %s164 = sadd.s32 %s163, 1
      %s165 = scalar_select %p162, %s163, %s164
      %p168 = pneg %p162
      %p169 = scmp.eq.s32.totalorder %s17, 1
      %p170 = por %p168, %p169
      %p171 = scmp.ne.s32.totalorder %s163, %s166
      %p172 = scmp.eq.s32.totalorder %s17, 0
      %p173 = por %p171, %p172
      %p174 = scmp.ne.s32.totalorder %s163, %s166
      %p175 = scmp.eq.s32.totalorder %s22, 1
      %p176 = por %p174, %p175
      %p177 = scmp.ne.s32.totalorder %s166, %s167
      %p178 = scmp.eq.s32.totalorder %s22, 0
      %p179 = por %p177, %p178
      %p180 = scmp.ne.s32.totalorder %s166, %s167
      %p181 = scmp.eq.s32.totalorder %s23, 1
      %p182 = por %p180, %p181
      %p184 = scmp.ne.s32.totalorder %s167, %s183
      %p185 = scmp.eq.s32.totalorder %s23, 0
      %p186 = por %p184, %p185
      %p187 = scmp.le.s32.totalorder 1, %s17
      %p188 = scmp.lt.s32.totalorder %s17, 3
      %p189 = pnand %p187, %p188
      %p190 = pneg %p189
      // Predicated region
      $region9: #{tpu_custom_call.1} parent=5 // pred_check
        _
      $region10: #{tpu_custom_call.1} parent=5 // pred_check_branch
        %192 = sbr.rel (%p189) target = $region12
      $region11: #{tpu_custom_call.1} parent=5 // pred_region
        %s193 = ssub.s32 %s17, 1
        // Predicated region
        $region13: #{tpu_custom_call.1} parent=11 // pred_check
          %p194 = pneg %p90
        $region14: #{tpu_custom_call.1} parent=11 // pred_check_branch
          %196 = sbr.rel (%p194) target = $region16
        $region15: #{tpu_custom_call.1} parent=11 // pred_region
          %198 = vsyncadd [#allocation3], 0
          %s199 = sshll.u32 %s2, 4
          %s200 = int_to_ptr.hbm [resolvable:$true] %s199
          %s201 = sshll.u32 [#allocation2], 4
          %s202 = int_to_ptr.vmem [resolvable:$true] %s201
          %207 = dma.hbm_to_vmem [thread:$0]  %s200, 2048, %s202, [#allocation3], 128, 128, 8
        $region16: #{tpu_custom_call.1} parent=11 // pred_fallthru
          _
        // Predicated region
        $region17: #{tpu_custom_call.1} parent=11 // pred_check
          %p208 = pneg %p111
        $region18: #{tpu_custom_call.1} parent=11 // pred_check_branch
          %210 = sbr.rel (%p208) target = $region20
        $region19: #{tpu_custom_call.1} parent=11 // pred_region
          _
        $region20: #{tpu_custom_call.1} parent=11 // pred_fallthru
          _
        // Predicated region
        $region21: #{tpu_custom_call.1} parent=11 // pred_check
          %p211 = pneg %p132
        $region22: #{tpu_custom_call.1} parent=11 // pred_check_branch
          %213 = sbr.rel (%p211) target = $region24
        $region23: #{tpu_custom_call.1} parent=11 // pred_region
          %215 = vsyncadd [#allocation6], 0
          %s216 = sshll.u32 %s4, 4
          %s217 = int_to_ptr.hbm [resolvable:$true] %s216
          %s218 = sshll.u32 [#allocation5], 4
          %s219 = int_to_ptr.vmem [resolvable:$true] %s218
          %224 = dma.hbm_to_vmem [thread:$0]  %s217, 2048, %s219, [#allocation6], 64, 64, 4
        $region24: #{tpu_custom_call.1} parent=11 // pred_fallthru
          _
        // Predicated region
        $region25: #{tpu_custom_call.1} parent=11 // pred_check
          %p225 = pneg %p153
        $region26: #{tpu_custom_call.1} parent=11 // pred_check_branch
          %227 = sbr.rel (%p225) target = $region28
        $region27: #{tpu_custom_call.1} parent=11 // pred_region
          _
        $region28: #{tpu_custom_call.1} parent=11 // pred_fallthru
          _
      $region12: #{tpu_custom_call.1} parent=5 // pred_fallthru
        _
      %p228 = scmp.lt.s32.totalorder %s17, 2
      // Predicated region
      $region29: #{tpu_custom_call.1} parent=5 // pred_check
        %p229 = pneg %p228
      $region30: #{tpu_custom_call.1} parent=5 // pred_check_branch
        %231 = sbr.rel (%p229) target = $region32
      $region31: #{tpu_custom_call.1} parent=5 // pred_region
        // Predicated region
        $region33: #{tpu_custom_call.1} parent=31 // pred_check
          %p232 = pneg %p37
        $region34: #{tpu_custom_call.1} parent=31 // pred_check_branch
          %234 = sbr.rel (%p232) target = $region36
        $region35: #{tpu_custom_call.1} parent=31 // pred_region
          %p235 = scmp.lt.s32.totalorder %s17, 1
          %s236 = scalar_select %p235, %s17, 1
          %s237 = smul.addr %s236, 8
          %s238 = scalar_lea.vmem %s0, %s237
        $region36: #{tpu_custom_call.1} parent=31 // pred_fallthru
          _
        // Predicated region
        $region37: #{tpu_custom_call.1} parent=31 // pred_check
          %p239 = pneg %p63
        $region38: #{tpu_custom_call.1} parent=31 // pred_check_branch
          %241 = sbr.rel (%p239) target = $region40
        $region39: #{tpu_custom_call.1} parent=31 // pred_region
          %p242 = scmp.lt.s32.totalorder %s17, 1
          %s243 = scalar_select %p242, %s17, 1
          %s244 = smul.addr %s243, 8
          %s245 = scalar_lea.vmem %s1, %s244
        $region40: #{tpu_custom_call.1} parent=31 // pred_fallthru
          _
      $region32: #{tpu_custom_call.1} parent=5 // pred_fallthru
        _
      %p246 = scmp.le.s32.totalorder 1, %s17
      %p247 = scmp.lt.s32.totalorder %s17, 3
      %p248 = pnand %p246, %p247
      %p249 = pneg %p248
      // Predicated region
      $region41: #{tpu_custom_call.1} parent=5 // pred_check
        _
      $region42: #{tpu_custom_call.1} parent=5 // pred_check_branch
        %251 = sbr.rel (%p248) target = $region44
      $region43: #{tpu_custom_call.1} parent=5 // pred_region
        %s252 = ssub.s32 %s17, 1
        // Predicated region
        $region45: #{tpu_custom_call.1} parent=43 // pred_check
          %p253 = pneg %p90
        $region46: #{tpu_custom_call.1} parent=43 // pred_check_branch
          %255 = sbr.rel (%p253) target = $region48
        $region47: #{tpu_custom_call.1} parent=43 // pred_region
          %257 = dma.done [#allocation3], 2048
        $region48: #{tpu_custom_call.1} parent=43 // pred_fallthru
          _
        // Predicated region
        $region49: #{tpu_custom_call.1} parent=43 // pred_check
          %p258 = pneg %p132
        $region50: #{tpu_custom_call.1} parent=43 // pred_check_branch
          %260 = sbr.rel (%p258) target = $region52
        $region51: #{tpu_custom_call.1} parent=43 // pred_region
          %262 = dma.done [#allocation6], 2048
        $region52: #{tpu_custom_call.1} parent=43 // pred_fallthru
          _
        %p263 = scmp.lt.s32.totalorder %s22, 1
        %s264 = scalar_select %p263, %s22, 1
        %s265 = smul.addr %s264, 8
        %s266 = scalar_lea.vmem %s0, %s265
        %p267 = pneg %p43
        %p268 = pneg %p40
        %p269 = scmp.lt.s32.totalorder %s22, 1
        %s270 = scalar_select %p269, %s22, 1
        %s271 = smul.addr %s270, 8
        %s272 = scalar_lea.vmem %s1, %s271
        %p273 = pneg %p69
        %p274 = pneg %p66
        %p275 = pneg %p90
        %p276 = pneg %p87
        %p277 = pneg %p111
        %p278 = pneg %p108
        %p279 = pneg %p132
        %p280 = pneg %p129
        %p281 = pneg %p153
        %p282 = pneg %p150
        %p283 = pneg %p179
        %p284 = pneg %p176
        %s285 = sand.u32 %s166, 1
        %s286 = scalar_lea.sflag [#allocation4], %s285
        %s287 = sand.u32 %s166, 1
        %s288 = smul.addr %s287, 8
        %s289 = scalar_lea.vmem [#allocation7], %s288
        %p290 = scmp.lt.s32.totalorder %s22, 1
        %s291 = scalar_select %p290, %s22, 1
        %s292 = smul.addr %s291, 8
        %s293 = scalar_lea.vmem %s0, %s292
        %p294 = scmp.lt.s32.totalorder %s22, 1
        %s295 = scalar_select %p294, %s22, 1
        %s296 = smul.addr %s295, 8
        %s297 = scalar_lea.vmem %s1, %s296
        %v298 = vld [vmem:[%s293] sm:$0xff]
        %v299 = vpack.c.bf16 %v298, %v298
        %v300 = vld [vmem:[#allocation2] sm:$0xff]
        %v301 = vld [vmem:[#allocation2 + $0x8] sm:$0xff]
        %v302 = vld [vmem:[#allocation2 + $0x10] sm:$0xff]
        %v303 = vld [vmem:[#allocation2 + $0x18] sm:$0xff]
        %v304 = vld [vmem:[#allocation2 + $0x20] sm:$0xff]
        %v305 = vld [vmem:[#allocation2 + $0x28] sm:$0xff]
        %v306 = vld [vmem:[#allocation2 + $0x30] sm:$0xff]
        %v307 = vld [vmem:[#allocation2 + $0x38] sm:$0xff]
        %v308 = vld [vmem:[#allocation2 + $0x40] sm:$0xff]
        %v309 = vld [vmem:[#allocation2 + $0x48] sm:$0xff]
        %v310 = vld [vmem:[#allocation2 + $0x50] sm:$0xff]
        %v311 = vld [vmem:[#allocation2 + $0x58] sm:$0xff]
        %v312 = vld [vmem:[#allocation2 + $0x60] sm:$0xff]
        %v313 = vld [vmem:[#allocation2 + $0x68] sm:$0xff]
        %v314 = vld [vmem:[#allocation2 + $0x70] sm:$0xff]
        %v315 = vld [vmem:[#allocation2 + $0x78] sm:$0xff]
        %v316 = vld [vmem:[%s3] sm:$0x3]
        %v318 = vperm.slane %v316, 0
        %v319 = vperm.slane %v316, 1
        %v338 = vunpack.c.l.b16 %v300
        %v339 = vunpack.c.h.b16 %v300
        %v340 = vunpack.c.l.b16 %v301
        %v341 = vunpack.c.h.b16 %v301
        %v342 = vunpack.c.l.b16 %v302
        %v343 = vunpack.c.h.b16 %v302
        %v344 = vunpack.c.l.b16 %v303
        %v345 = vunpack.c.h.b16 %v303
        %v346 = vunpack.c.l.b16 %v304
        %v347 = vunpack.c.h.b16 %v304
        %v348 = vunpack.c.l.b16 %v305
        %v349 = vunpack.c.h.b16 %v305
        %v350 = vunpack.c.l.b16 %v306
        %v351 = vunpack.c.h.b16 %v306
        %v352 = vunpack.c.l.b16 %v307
        %v353 = vunpack.c.h.b16 %v307
        %v354 = vunpack.c.l.b16 %v308
        %v355 = vunpack.c.h.b16 %v308
        %v356 = vunpack.c.l.b16 %v309
        %v357 = vunpack.c.h.b16 %v309
        %v358 = vunpack.c.l.b16 %v310
        %v359 = vunpack.c.h.b16 %v310
        %v360 = vunpack.c.l.b16 %v311
        %v361 = vunpack.c.h.b16 %v311
        %v362 = vunpack.c.l.b16 %v312
        %v363 = vunpack.c.h.b16 %v312
        %v364 = vunpack.c.l.b16 %v313
        %v365 = vunpack.c.h.b16 %v313
        %v366 = vunpack.c.l.b16 %v314
        %v367 = vunpack.c.h.b16 %v314
        %v368 = vunpack.c.l.b16 %v315
        %v369 = vunpack.c.h.b16 %v315
        %v370 = vpack.c.b16 %v340, %v338
        %v371 = vpack.c.b16 %v341, %v339
        %v372 = vpack.c.b16 %v344, %v342
        %v373 = vpack.c.b16 %v345, %v343
        %v374 = vpack.c.b16 %v348, %v346
        %v375 = vpack.c.b16 %v349, %v347
        %v376 = vpack.c.b16 %v352, %v350
        %v377 = vpack.c.b16 %v353, %v351
        %v378 = vpack.c.b16 %v356, %v354
        %v379 = vpack.c.b16 %v357, %v355
        %v380 = vpack.c.b16 %v360, %v358
        %v381 = vpack.c.b16 %v361, %v359
        %v382 = vpack.c.b16 %v364, %v362
        %v383 = vpack.c.b16 %v365, %v363
        %v384 = vpack.c.b16 %v368, %v366
        %v385 = vpack.c.b16 %v369, %v367
        %402 = vmatpush.bf16.msra.mxu0 %v384
        %403 = vmatpush.bf16.msra.mxu0 %v382
        %404 = vmatpush.bf16.msra.mxu0 %v380
        %405 = vmatpush.bf16.msra.mxu0 %v378
        %406 = vmatpush.bf16.msra.mxu0 %v376
        %407 = vmatpush.bf16.msra.mxu0 %v374
        %408 = vmatpush.bf16.msra.mxu0 %v372
        %409 = vmatpush.bf16.msra.mxu0 %v370
        %410 = vmatmul.bf16.gmra.mxu0 %v299
        %v411 = vpop.f32.mrf.mxu0
        %v412 = vadd.f32 %v318, %v411
        %v413 = vpop.f32.mrf.mxu0
        %414 = vdwg.mxu0
        %415 = vmatpush.bf16.msra.mxu0 %v385
        %416 = vmatpush.bf16.msra.mxu0 %v383
        %417 = vmatpush.bf16.msra.mxu0 %v381
        %418 = vmatpush.bf16.msra.mxu0 %v379
        %419 = vmatpush.bf16.msra.mxu0 %v377
        %420 = vmatpush.bf16.msra.mxu0 %v375
        %421 = vmatpush.bf16.msra.mxu0 %v373
        %422 = vmatpush.bf16.msra.mxu0 %v371
        %423 = vmatmul.bf16.gmra.mxu0 %v299
        %v424 = vpop.f32.mrf.mxu0
        %v425 = vadd.f32 %v319, %v424
        %v426 = vpop.f32.mrf.mxu0
        %427 = vdwg.mxu0
        %v428 = vmax.f32 %v412, 0.0
        %v429 = vmax.f32 %v425, 0.0
        %v430 = vpack.c.bf16 %v428, %v428
        %v431 = vpack.c.bf16 %v429, %v429
        %v432 = vld [vmem:[#allocation5] sm:$0xf]
        %v433 = vld [vmem:[#allocation5 + $0x4] sm:$0xf]
        %v434 = vld [vmem:[#allocation5 + $0x8] sm:$0xf]
        %v435 = vld [vmem:[#allocation5 + $0xc] sm:$0xf]
        %v436 = vld [vmem:[#allocation5 + $0x10] sm:$0xf]
        %v437 = vld [vmem:[#allocation5 + $0x14] sm:$0xf]
        %v438 = vld [vmem:[#allocation5 + $0x18] sm:$0xf]
        %v439 = vld [vmem:[#allocation5 + $0x1c] sm:$0xf]
        %v440 = vld [vmem:[#allocation5 + $0x20] sm:$0xf]
        %v441 = vld [vmem:[#allocation5 + $0x24] sm:$0xf]
        %v442 = vld [vmem:[#allocation5 + $0x28] sm:$0xf]
        %v443 = vld [vmem:[#allocation5 + $0x2c] sm:$0xf]
        %v444 = vld [vmem:[#allocation5 + $0x30] sm:$0xf]
        %v445 = vld [vmem:[#allocation5 + $0x34] sm:$0xf]
        %v446 = vld [vmem:[#allocation5 + $0x38] sm:$0xf]
        %v447 = vld [vmem:[#allocation5 + $0x3c] sm:$0xf]
        %v448 = vld [vmem:[#allocation5 + $0x40] sm:$0xf]
        %v449 = vld [vmem:[#allocation5 + $0x44] sm:$0xf]
        %v450 = vld [vmem:[#allocation5 + $0x48] sm:$0xf]
        %v451 = vld [vmem:[#allocation5 + $0x4c] sm:$0xf]
        %v452 = vld [vmem:[#allocation5 + $0x50] sm:$0xf]
        %v453 = vld [vmem:[#allocation5 + $0x54] sm:$0xf]
        %v454 = vld [vmem:[#allocation5 + $0x58] sm:$0xf]
        %v455 = vld [vmem:[#allocation5 + $0x5c] sm:$0xf]
        %v456 = vld [vmem:[#allocation5 + $0x60] sm:$0xf]
        %v457 = vld [vmem:[#allocation5 + $0x64] sm:$0xf]
        %v458 = vld [vmem:[#allocation5 + $0x68] sm:$0xf]
        %v459 = vld [vmem:[#allocation5 + $0x6c] sm:$0xf]
        %v460 = vld [vmem:[#allocation5 + $0x70] sm:$0xf]
        %v461 = vld [vmem:[#allocation5 + $0x74] sm:$0xf]
        %v462 = vld [vmem:[#allocation5 + $0x78] sm:$0xf]
        %v463 = vld [vmem:[#allocation5 + $0x7c] sm:$0xf]
        %v464 = vld [vmem:[%s5] sm:$0x1]
        %v466 = vperm.slane %v464, 0
        %v500 = vunpack.c.l.b16 %v432
        %v501 = vunpack.c.l.b16 %v433
        %v502 = vunpack.c.l.b16 %v434
        %v503 = vunpack.c.l.b16 %v435
        %v504 = vunpack.c.l.b16 %v436
        %v505 = vunpack.c.l.b16 %v437
        %v506 = vunpack.c.l.b16 %v438
        %v507 = vunpack.c.l.b16 %v439
        %v508 = vunpack.c.l.b16 %v440
        %v509 = vunpack.c.l.b16 %v441
        %v510 = vunpack.c.l.b16 %v442
        %v511 = vunpack.c.l.b16 %v443
        %v512 = vunpack.c.l.b16 %v444
        %v513 = vunpack.c.l.b16 %v445
        %v514 = vunpack.c.l.b16 %v446
        %v515 = vunpack.c.l.b16 %v447
        %v516 = vunpack.c.l.b16 %v448
        %v517 = vunpack.c.l.b16 %v449
        %v518 = vunpack.c.l.b16 %v450
        %v519 = vunpack.c.l.b16 %v451
        %v520 = vunpack.c.l.b16 %v452
        %v521 = vunpack.c.l.b16 %v453
        %v522 = vunpack.c.l.b16 %v454
        %v523 = vunpack.c.l.b16 %v455
        %v524 = vunpack.c.l.b16 %v456
        %v525 = vunpack.c.l.b16 %v457
        %v526 = vunpack.c.l.b16 %v458
        %v527 = vunpack.c.l.b16 %v459
        %v528 = vunpack.c.l.b16 %v460
        %v529 = vunpack.c.l.b16 %v461
        %v530 = vunpack.c.l.b16 %v462
        %v531 = vunpack.c.l.b16 %v463
        %v532 = vpack.c.b16 %v501, %v500
        %v533 = vpack.c.b16 %v503, %v502
        %v534 = vpack.c.b16 %v505, %v504
        %v535 = vpack.c.b16 %v507, %v506
        %v536 = vpack.c.b16 %v509, %v508
        %v537 = vpack.c.b16 %v511, %v510
        %v538 = vpack.c.b16 %v513, %v512
        %v539 = vpack.c.b16 %v515, %v514
        %v540 = vpack.c.b16 %v517, %v516
        %v541 = vpack.c.b16 %v519, %v518
        %v542 = vpack.c.b16 %v521, %v520
        %v543 = vpack.c.b16 %v523, %v522
        %v544 = vpack.c.b16 %v525, %v524
        %v545 = vpack.c.b16 %v527, %v526
        %v546 = vpack.c.b16 %v529, %v528
        %v547 = vpack.c.b16 %v531, %v530
        %564 = vmatpush.bf16.msra.mxu0 %v539
        %565 = vmatpush.bf16.msra.mxu0 %v538
        %566 = vmatpush.bf16.msra.mxu0 %v537
        %567 = vmatpush.bf16.msra.mxu0 %v536
        %568 = vmatpush.bf16.msra.mxu0 %v535
        %569 = vmatpush.bf16.msra.mxu0 %v534
        %570 = vmatpush.bf16.msra.mxu0 %v533
        %571 = vmatpush.bf16.msra.mxu0 %v532
        %572 = vmatmul.bf16.gmra.mxu0 %v430
        %v573 = vpop.f32.mrf.mxu0
        %v574 = vadd.f32 %v466, %v573
        %v575 = vpop.f32.mrf.mxu0
        %576 = vdwg.mxu0
        %577 = vmatpush.bf16.msra.mxu0 %v547
        %578 = vmatpush.bf16.msra.mxu0 %v546
        %579 = vmatpush.bf16.msra.mxu0 %v545
        %580 = vmatpush.bf16.msra.mxu0 %v544
        %581 = vmatpush.bf16.msra.mxu0 %v543
        %582 = vmatpush.bf16.msra.mxu0 %v542
        %583 = vmatpush.bf16.msra.mxu0 %v541
        %584 = vmatpush.bf16.msra.mxu0 %v540
        %585 = vmatmul.bf16.gmra.mxu0 %v431
        %v586 = vpop.f32.mrf.mxu0
        %v587 = vadd.f32 %v574, %v586
        %v588 = vpop.f32.mrf.mxu0
        %589 = vdwg.mxu0
        %v590 = vmax.f32 %v587, 0.0
        %v591 = vld [vmem:[%s297] sm:$0xff]
        %593 = vset.pattern.permute.xlu0 0
        %594 = vperm.xlu0 %593, %v591
        %v595 = vpop.permute.xlu0 %594
        %v597 = vmul.f32 %v590, %v595
        %v598 = vadd.f32 %v298, %v597
        %599 = vst [vmem:[%s289] sm:$0xff] %v598
        %s600 = sand.u32 %s166, 1
        %s601 = scalar_lea.sflag [#allocation4], %s600
        %s602 = sand.u32 %s166, 1
        %s603 = smul.addr %s602, 8
        %s604 = scalar_lea.vmem [#allocation7], %s603
        // Predicated region
        $region53: #{tpu_custom_call.1} parent=43 // pred_check
          %p605 = pneg %p176
        $region54: #{tpu_custom_call.1} parent=43 // pred_check_branch
          %607 = sbr.rel (%p605) target = $region56
        $region55: #{tpu_custom_call.1} parent=43 // pred_region
          %609 = vsyncadd %s601, 0
          %s610 = smul.addr %s22, 8
          %s611 = scalar_lea.hbm %s6, %s610
          %s613 = sshll.u32 %s604, 4
          %s614 = int_to_ptr.vmem [resolvable:$true] %s613
          %s615 = sshll.u32 %s611, 4
          %s616 = int_to_ptr.hbm [resolvable:$true] %s615
          %618 = dma.vmem_to_hbm [thread:$0]  %s614, 128, %s616, %s601
        $region56: #{tpu_custom_call.1} parent=43 // pred_fallthru
          _
      $region44: #{tpu_custom_call.1} parent=5 // pred_fallthru
        _
      %p619 = scmp.le.s32.totalorder 2, %s17
      // Predicated region
      $region57: #{tpu_custom_call.1} parent=5 // pred_check
        %p620 = pneg %p619
      $region58: #{tpu_custom_call.1} parent=5 // pred_check_branch
        %622 = sbr.rel (%p620) target = $region60
      $region59: #{tpu_custom_call.1} parent=5 // pred_region
        %s623 = ssub.s32 %s17, 2
        // Predicated region
        $region61: #{tpu_custom_call.1} parent=59 // pred_check
          %p624 = pneg %p182
        $region62: #{tpu_custom_call.1} parent=59 // pred_check_branch
          %626 = sbr.rel (%p624) target = $region64
        $region63: #{tpu_custom_call.1} parent=59 // pred_region
          %s627 = sand.u32 %s167, 1
          %s628 = scalar_lea.sflag [#allocation4], %s627
          %s629 = sand.u32 %s167, 1
          %s630 = smul.addr %s629, 8
          %s631 = scalar_lea.vmem [#allocation7], %s630
          %633 = dma.done %s628, 128
        $region64: #{tpu_custom_call.1} parent=59 // pred_fallthru
          _
      $region60: #{tpu_custom_call.1} parent=5 // pred_fallthru
        _
    $region6: #{tpu_custom_call.1} parent=1 // loop_footer
      %s21 = sadd.s32 1, %s17
    $region7: #{tpu_custom_call.1} parent=1 // loop_footer_branch
      %16 = sbr.rel target = $region3
    $region8: #{tpu_custom_call.1} parent=1 // loop_exit
      _
    %634 = vsyncpa [#allocation3], 1
    %s635 = scalar_lea.sflag [#allocation3], 1
    %636 = vsyncpa %s635, 1
    %637 = vsyncpa [#allocation6], 1
    %638 = vsyncpa [#allocation4], 1
    %s639 = scalar_lea.sflag [#allocation4], 1
    %640 = vsyncpa %s639, 1

</llo_original>
